<compile_context>
chip_gen: v7x
topology: tpu7x:2x2x1
jax: 0.10.0
libtpu: 0.0.40
codegen_flags: <defaults>
</compile_context>

<pallas_src>
import jax
import jax.numpy as jnp
from jax.experimental import pallas as pl
from jax.experimental.pallas import tpu as pltpu


# ---------------------------------------------------------------------------
# Kernel: all G triplet graphs stacked along the row axis, one invocation.
# ---------------------------------------------------------------------------
def _gin_forward_kernel(x_ref,                   # VMEM (NT, 1)   raw node features
                        xsrc_ref,                # VMEM (ET, 1)   raw x gathered by src
                        ea_ref,                  # VMEM (ET, 2)   edge attributes
                        dst_ref,                 # VMEM (1, ET)   int32 global dst ids
                        eps_ref,                 # SMEM (1, 1)
                        wenc_ref, benc_ref,      # VMEM (1, H), (1, H)
                        wedge_ref, bedge_ref,    # VMEM (2, H), (1, H)
                        w1_ref, b1_ref,          # VMEM (H, H), (1, H)
                        w2_ref, b2_ref,          # VMEM (H, H), (1, H)
                        wfc_ref, bfc_ref,        # VMEM (H, OP), (1, OP)
                        out_ref):                # VMEM (BGT, OP)  lane-dense
    f32 = jnp.float32
    n_total = x_ref.shape[0]
    e_total = ea_ref.shape[0]
    bg_total = out_ref.shape[0]
    npg = n_total // bg_total                    # nodes per pooled graph segment

    wenc = wenc_ref[...]                         # (1, H)
    benc = benc_ref[...]                         # (1, H)

    # node_encoder (input_dim == 1): pure VPU broadcast-FMA, no MXU.
    h = x_ref[...] * wenc + benc                                 # (NT, H)

    # Edge messages, fully vectorised over all edges (edge_dim == 2 -> VPU FMAs).
    e_emb = (ea_ref[:, 0:1] * wedge_ref[0:1, :]
             + ea_ref[:, 1:2] * wedge_ref[1:2, :]
             + bedge_ref[...])                                   # (ET, H)
    h_src = xsrc_ref[...] * wenc + benc                          # (ET, H)
    msg = jnp.maximum(h_src + e_emb, 0.0)                        # (ET, H)

    # Scatter-add via one-hot MXU matmul: onehot[n, e] = (n == dst[e]).
    node_ids = jax.lax.broadcasted_iota(jnp.int32, (n_total, e_total), 0)
    onehot = (node_ids == dst_ref[...]).astype(f32)              # (NT, ET)
    agg = jnp.dot(onehot, msg, preferred_element_type=f32)       # (NT, H)

    # GINEConv epilogue: nn((1 + eps) * x + agg), nn = Lin->ReLU->Dropout->Lin->ReLU
    # TODO(synk): dropout omitted (eval/inference semantics -> identity).
    z = (1.0 + eps_ref[0, 0]) * h + agg
    z = jnp.maximum(jnp.dot(z, w1_ref[...], preferred_element_type=f32)
                    + b1_ref[...], 0.0)
    z = jnp.maximum(jnp.dot(z, w2_ref[...], preferred_element_type=f32)
                    + b2_ref[...], 0.0)                          # (NT, H)

    # global_add_pool over contiguous equal-sized segments as a ones-block matmul.
    rows = jax.lax.broadcasted_iota(jnp.int32, (bg_total, n_total), 0)
    cols = jax.lax.broadcasted_iota(jnp.int32, (bg_total, n_total), 1)
    pool_mat = ((cols >= rows * npg) & (cols < (rows + 1) * npg)).astype(f32)
    pooled = jnp.dot(pool_mat, z, preferred_element_type=f32)    # (BGT, H)

    # fc, lane-dense (OP = 128) output store.
    out_ref[...] = (jnp.dot(pooled, wfc_ref[...], preferred_element_type=f32)
                    + bfc_ref[...])                              # (BGT, OP)


# ---------------------------------------------------------------------------
# Wrapper: single pallas_call, triplet graphs stacked along the row axis.
# ---------------------------------------------------------------------------
def gin_forward_triplet(xs, edge_indexs, edge_attrs, batch, params, num_graphs):
    """xs: (G,N,1) f32; edge_indexs: (G,2,E) int; edge_attrs: (G,E,2) f32;
    batch: (N,) contiguous equal-sized graph assignment (shared across G)."""
    G, N, input_dim = xs.shape
    E = edge_indexs.shape[2]
    H = params["w1"].shape[0]
    O = params["wfc"].shape[1]
    OP = 128                                      # lane-dense output padding

    assert input_dim == 1, "graph_encoding='standard' (input_dim=1) expected"
    assert N % num_graphs == 0
    # TODO(synk): ragged / non-contiguous `batch` would need per-segment offsets
    # (scalar-prefetched) instead of the iota-built pooling matrix.

    NT, ET, BGT = G * N, G * E, G * num_graphs

    src = edge_indexs[:, 0, :].astype(jnp.int32)                 # (G, E)
    dst = edge_indexs[:, 1, :].astype(jnp.int32)                 # (G, E)
    # O(E) raw-feature gather; encoder is affine so it commutes with the gather.
    x_src = jnp.take_along_axis(xs, src[:, :, None], axis=1)     # (G, E, 1)

    # Stack the G graphs along the row axis; offset dst into global node ids.
    x_flat = xs.reshape(NT, input_dim)                           # (NT, 1)
    xsrc_flat = x_src.reshape(ET, input_dim)                     # (ET, 1)
    ea_flat = edge_attrs.reshape(ET, 2)                          # (ET, 2)
    offsets = (jnp.arange(G, dtype=jnp.int32) * N)[:, None]      # (G, 1)
    dst_flat = (dst + offsets).reshape(1, ET)                    # (1, ET)

    wfc_p = jnp.zeros((H, OP), jnp.float32).at[:, :O].set(params["wfc"])
    bfc_p = jnp.zeros((1, OP), jnp.float32).at[:, :O].set(params["bfc"])

    vmem = pl.BlockSpec(memory_space=pltpu.MemorySpace.VMEM)
    smem = pl.BlockSpec(memory_space=pltpu.MemorySpace.SMEM)

    flops = (2 * NT * H + 6 * ET * H                 # encoder + edge messages
             + 2 * NT * ET * H                       # one-hot scatter matmul
             + 4 * NT * H * H                        # MLP
             + 2 * BGT * NT * H                      # pooling matmul
             + 2 * BGT * H * OP)                     # fc
    bytes_accessed = 4 * (x_flat.size + xsrc_flat.size + ea_flat.size
                          + dst_flat.size + 2 * H * H + H * OP + 6 * H + OP
                          + BGT * OP)

    out = pl.pallas_call(
        _gin_forward_kernel,
        out_shape=jax.ShapeDtypeStruct((BGT, OP), jnp.float32),
        in_specs=[
            vmem,            # x_flat
            vmem,            # xsrc_flat
            vmem,            # ea_flat
            vmem,            # dst_flat
            smem,            # eps
            vmem, vmem,      # wenc, benc
            vmem, vmem,      # wedge, bedge
            vmem, vmem,      # w1, b1
            vmem, vmem,      # w2, b2
            vmem, vmem,      # wfc_p, bfc_p
        ],
        out_specs=vmem,
        cost_estimate=pl.CostEstimate(flops=flops, transcendentals=0,
                                      bytes_accessed=bytes_accessed),
    )(x_flat, xsrc_flat, ea_flat, dst_flat, params["eps"],
      params["wenc"], params["benc"], params["wedge"], params["bedge"],
      params["w1"], params["b1"], params["w2"], params["b2"],
      wfc_p, bfc_p)

    # Strip lane padding and split back into the G triplet elements.
    return out[:, :O].reshape(G, num_graphs, O)


# ---------------------------------------------------------------------------
# Pure-JAX reference (scatter-add form) for correctness check
# ---------------------------------------------------------------------------
def gin_forward_ref(x, edge_index, edge_attr, batch, params, num_graphs):
    h = x @ params["wenc"] + params["benc"]
    src, dst = edge_index[0], edge_index[1]
    e = edge_attr @ params["wedge"] + params["bedge"]
    msg = jnp.maximum(h[src] + e, 0.0)
    agg = jnp.zeros_like(h).at[dst].add(msg)
    z = (1.0 + params["eps"][0, 0]) * h + agg
    z = jnp.maximum(z @ params["w1"] + params["b1"], 0.0)
    z = jnp.maximum(z @ params["w2"] + params["b2"], 0.0)
    pooled = jnp.zeros((num_graphs, z.shape[1]), jnp.float32).at[batch].add(z)
    return pooled @ params["wfc"] + params["bfc"]


def make_params(key, input_dim, edge_dim, hidden, output_dim):
    ks = jax.random.split(key, 5)
    return {
        "wenc": 0.1 * jax.random.normal(ks[0], (input_dim, hidden), jnp.float32),
        "benc": 0.05 * jnp.ones((1, hidden), jnp.float32),
        "wedge": 0.1 * jax.random.normal(ks[1], (edge_dim, hidden), jnp.float32),
        "bedge": 0.05 * jnp.ones((1, hidden), jnp.float32),
        "eps": jnp.zeros((1, 1), jnp.float32),     # train_eps=True, init 0.0
        "w1": 0.1 * jax.random.normal(ks[2], (hidden, hidden), jnp.float32),
        "b1": 0.02 * jnp.ones((1, hidden), jnp.float32),
        "w2": 0.1 * jax.random.normal(ks[3], (hidden, hidden), jnp.float32),
        "b2": 0.02 * jnp.ones((1, hidden), jnp.float32),
        "wfc": 0.1 * jax.random.normal(ks[4], (hidden, output_dim), jnp.float32),
        "bfc": 0.01 * jnp.ones((1, output_dim), jnp.float32),
    }


def make_graph(key, n_nodes, n_edges, input_dim, edge_dim, num_graphs):
    k1, k2, k3, k4 = jax.random.split(key, 4)
    x = jax.random.normal(k1, (n_nodes, input_dim), jnp.float32)
    src = jax.random.randint(k2, (n_edges,), 0, n_nodes)
    dst = jax.random.randint(k3, (n_edges,), 0, n_nodes)
    edge_index = jnp.stack([src, dst], axis=0)
    edge_attr = jax.random.normal(k4, (n_edges, edge_dim), jnp.float32)
    batch = jnp.repeat(jnp.arange(num_graphs), n_nodes // num_graphs)
    return x, edge_index, edge_attr, batch


if __name__ == "__main__":
    HIDDEN, OUTPUT_DIM = 32, 8
    INPUT_DIM, EDGE_DIM = 1, 2        # graph_encoding='standard'
    N_NODES, N_EDGES, NUM_GRAPHS = 16, 32, 2

    root = jax.random.PRNGKey(0)
    kp, ka, kpos, kneg = jax.random.split(root, 4)
    params = make_params(kp, INPUT_DIM, EDGE_DIM, HIDDEN, OUTPUT_DIM)

    # triplet forward: anchor / positive / negative graph batches, one kernel call
    graphs = [make_graph(k, N_NODES, N_EDGES, INPUT_DIM, EDGE_DIM, NUM_GRAPHS)
              for k in (ka, kpos, kneg)]
    xs = jnp.stack([g[0] for g in graphs])            # (3, N, 1)
    eis = jnp.stack([g[1] for g in graphs])           # (3, 2, E)
    eas = jnp.stack([g[2] for g in graphs])           # (3, E, 2)
    batch = graphs[0][3]

    outs = gin_forward_triplet(xs, eis, eas, batch, params, NUM_GRAPHS)
    outs = jax.block_until_ready(outs)

    for gidx, (x, ei, ea, b) in enumerate(graphs):
        ref = gin_forward_ref(x, ei, ea, b, params, NUM_GRAPHS)
        assert jnp.allclose(outs[gidx], ref, atol=1e-4, rtol=1e-4), f"mismatch graph {gidx}"

    anchor_out, positive_out, negative_out = outs[0], outs[1], outs[2]
    jax.block_until_ready((anchor_out, positive_out, negative_out))
    print("KERNEL_OK")
</pallas_src>

<mosaic_0001>
module attributes {stable_mosaic.version = 11 : i64} {
  func.func @_gin_forward_kernel(%arg0: memref<48x1xf32, #tpu.memory_space<vmem>>, %arg1: memref<96x1xf32, #tpu.memory_space<vmem>>, %arg2: memref<96x2xf32, #tpu.memory_space<vmem>>, %arg3: memref<1x96xi32, #tpu.memory_space<vmem>>, %arg4: memref<1x1xf32, #tpu.memory_space<smem>>, %arg5: memref<1x32xf32, #tpu.memory_space<vmem>>, %arg6: memref<1x32xf32, #tpu.memory_space<vmem>>, %arg7: memref<2x32xf32, #tpu.memory_space<vmem>>, %arg8: memref<1x32xf32, #tpu.memory_space<vmem>>, %arg9: memref<32x32xf32, #tpu.memory_space<vmem>>, %arg10: memref<1x32xf32, #tpu.memory_space<vmem>>, %arg11: memref<32x32xf32, #tpu.memory_space<vmem>>, %arg12: memref<1x32xf32, #tpu.memory_space<vmem>>, %arg13: memref<32x128xf32, #tpu.memory_space<vmem>>, %arg14: memref<1x128xf32, #tpu.memory_space<vmem>>, %arg15: memref<6x128xf32, #tpu.memory_space<vmem>>) attributes {dimension_semantics = [], scalar_prefetch = 0 : i64, scratch_operands = 0 : i64, tpu.core_type = #tpu.core_type<tc>} {
    %c0 = arith.constant 0 : index
    %c0_0 = arith.constant 0 : index
    %0 = vector.load %arg5[%c0, %c0_0] : memref<1x32xf32, #tpu.memory_space<vmem>>, vector<1x32xf32>
    %c0_1 = arith.constant 0 : index
    %c0_2 = arith.constant 0 : index
    %1 = vector.load %arg6[%c0_1, %c0_2] : memref<1x32xf32, #tpu.memory_space<vmem>>, vector<1x32xf32>
    %c0_3 = arith.constant 0 : index
    %c0_4 = arith.constant 0 : index
    %2 = vector.load %arg0[%c0_3, %c0_4] : memref<48x1xf32, #tpu.memory_space<vmem>>, vector<48x1xf32>
    %3 = vector.broadcast %2 : vector<48x1xf32> to vector<48x32xf32>
    %4 = vector.broadcast %0 : vector<1x32xf32> to vector<48x32xf32>
    %5 = arith.mulf %3, %4 : vector<48x32xf32>
    %6 = vector.broadcast %1 : vector<1x32xf32> to vector<48x32xf32>
    %7 = arith.addf %5, %6 : vector<48x32xf32>
    %c0_5 = arith.constant 0 : index
    %c0_6 = arith.constant 0 : index
    %8 = vector.load %arg2[%c0_5, %c0_6] : memref<96x2xf32, #tpu.memory_space<vmem>>, vector<96x1xf32>
    %c0_7 = arith.constant 0 : index
    %c0_8 = arith.constant 0 : index
    %9 = vector.load %arg7[%c0_7, %c0_8] : memref<2x32xf32, #tpu.memory_space<vmem>>, vector<1x32xf32>
    %10 = vector.broadcast %8 : vector<96x1xf32> to vector<96x32xf32>
    %11 = vector.broadcast %9 : vector<1x32xf32> to vector<96x32xf32>
    %12 = arith.mulf %10, %11 : vector<96x32xf32>
    %c0_9 = arith.constant 0 : index
    %c1 = arith.constant 1 : index
    %13 = vector.load %arg2[%c0_9, %c1] : memref<96x2xf32, #tpu.memory_space<vmem>>, vector<96x1xf32>
    %c1_10 = arith.constant 1 : index
    %c0_11 = arith.constant 0 : index
    %14 = vector.load %arg7[%c1_10, %c0_11] : memref<2x32xf32, #tpu.memory_space<vmem>>, vector<1x32xf32>
    %15 = vector.broadcast %13 : vector<96x1xf32> to vector<96x32xf32>
    %16 = vector.broadcast %14 : vector<1x32xf32> to vector<96x32xf32>
    %17 = arith.mulf %15, %16 : vector<96x32xf32>
    %18 = arith.addf %12, %17 : vector<96x32xf32>
    %c0_12 = arith.constant 0 : index
    %c0_13 = arith.constant 0 : index
    %19 = vector.load %arg8[%c0_12, %c0_13] : memref<1x32xf32, #tpu.memory_space<vmem>>, vector<1x32xf32>
    %20 = vector.broadcast %19 : vector<1x32xf32> to vector<96x32xf32>
    %21 = arith.addf %18, %20 : vector<96x32xf32>
    %c0_14 = arith.constant 0 : index
    %c0_15 = arith.constant 0 : index
    %22 = vector.load %arg1[%c0_14, %c0_15] : memref<96x1xf32, #tpu.memory_space<vmem>>, vector<96x1xf32>
    %23 = vector.broadcast %22 : vector<96x1xf32> to vector<96x32xf32>
    %24 = vector.broadcast %0 : vector<1x32xf32> to vector<96x32xf32>
    %25 = arith.mulf %23, %24 : vector<96x32xf32>
    %26 = vector.broadcast %1 : vector<1x32xf32> to vector<96x32xf32>
    %27 = arith.addf %25, %26 : vector<96x32xf32>
    %28 = arith.addf %27, %21 : vector<96x32xf32>
    %cst = arith.constant 0.000000e+00 : f32
    %29 = vector.broadcast %cst : f32 to vector<96x32xf32>
    %30 = arith.maximumf %28, %29 : vector<96x32xf32>
    %31 = tpu.iota {dimensions = array<i32: 0>} : vector<48x96xi32>
    %c0_16 = arith.constant 0 : index
    %c0_17 = arith.constant 0 : index
    %32 = vector.load %arg3[%c0_16, %c0_17] : memref<1x96xi32, #tpu.memory_space<vmem>>, vector<1x96xi32>
    %33 = vector.broadcast %32 : vector<1x96xi32> to vector<48x96xi32>
    %34 = arith.cmpi eq, %31, %33 : vector<48x96xi32>
    %35 = arith.extui %34 : vector<48x96xi1> to vector<48x96xi32>
    %36 = arith.sitofp %35 : vector<48x96xi32> to vector<48x96xf32>
    %cst_18 = arith.constant dense<0.000000e+00> : vector<48x32xf32>
    %37 = tpu.matmul %36, %30, %cst_18 {dimension_numbers = #tpu.dot_dimension_numbers<[1], [0], [0], [1], [0, 0, 1, 1], [], []>} : vector<48x96xf32>, vector<96x32xf32>, vector<48x32xf32> -> vector<48x32xf32>
    %c0_19 = arith.constant 0 : index
    %c0_20 = arith.constant 0 : index
    %38 = memref.load %arg4[%c0_19, %c0_20] : memref<1x1xf32, #tpu.memory_space<smem>>
    %cst_21 = arith.constant 1.000000e+00 : f32
    %39 = arith.addf %cst_21, %38 : f32
    %40 = vector.broadcast %39 : f32 to vector<48x32xf32>
    %41 = arith.mulf %40, %7 : vector<48x32xf32>
    %42 = arith.addf %41, %37 : vector<48x32xf32>
    %c0_22 = arith.constant 0 : index
    %c0_23 = arith.constant 0 : index
    %43 = vector.load %arg9[%c0_22, %c0_23] : memref<32x32xf32, #tpu.memory_space<vmem>>, vector<32x32xf32>
    %cst_24 = arith.constant dense<0.000000e+00> : vector<48x32xf32>
    %44 = tpu.matmul %42, %43, %cst_24 {dimension_numbers = #tpu.dot_dimension_numbers<[1], [0], [0], [1], [0, 0, 1, 1], [], []>} : vector<48x32xf32>, vector<32x32xf32>, vector<48x32xf32> -> vector<48x32xf32>
    %c0_25 = arith.constant 0 : index
    %c0_26 = arith.constant 0 : index
    %45 = vector.load %arg10[%c0_25, %c0_26] : memref<1x32xf32, #tpu.memory_space<vmem>>, vector<1x32xf32>
    %46 = vector.broadcast %45 : vector<1x32xf32> to vector<48x32xf32>
    %47 = arith.addf %44, %46 : vector<48x32xf32>
    %cst_27 = arith.constant 0.000000e+00 : f32
    %48 = vector.broadcast %cst_27 : f32 to vector<48x32xf32>
    %49 = arith.maximumf %47, %48 : vector<48x32xf32>
    %c0_28 = arith.constant 0 : index
    %c0_29 = arith.constant 0 : index
    %50 = vector.load %arg11[%c0_28, %c0_29] : memref<32x32xf32, #tpu.memory_space<vmem>>, vector<32x32xf32>
    %cst_30 = arith.constant dense<0.000000e+00> : vector<48x32xf32>
    %51 = tpu.matmul %49, %50, %cst_30 {dimension_numbers = #tpu.dot_dimension_numbers<[1], [0], [0], [1], [0, 0, 1, 1], [], []>} : vector<48x32xf32>, vector<32x32xf32>, vector<48x32xf32> -> vector<48x32xf32>
    %c0_31 = arith.constant 0 : index
    %c0_32 = arith.constant 0 : index
    %52 = vector.load %arg12[%c0_31, %c0_32] : memref<1x32xf32, #tpu.memory_space<vmem>>, vector<1x32xf32>
    %53 = vector.broadcast %52 : vector<1x32xf32> to vector<48x32xf32>
    %54 = arith.addf %51, %53 : vector<48x32xf32>
    %cst_33 = arith.constant 0.000000e+00 : f32
    %55 = vector.broadcast %cst_33 : f32 to vector<48x32xf32>
    %56 = arith.maximumf %54, %55 : vector<48x32xf32>
    %57 = tpu.iota {dimensions = array<i32: 0>} : vector<6x48xi32>
    %58 = tpu.iota {dimensions = array<i32: 1>} : vector<6x48xi32>
    %c8_i32 = arith.constant 8 : i32
    %59 = vector.broadcast %c8_i32 : i32 to vector<6x48xi32>
    %60 = arith.muli %57, %59 : vector<6x48xi32>
    %61 = arith.cmpi sge, %58, %60 : vector<6x48xi32>
    %c1_i32 = arith.constant 1 : i32
    %62 = vector.broadcast %c1_i32 : i32 to vector<6x48xi32>
    %63 = arith.addi %57, %62 : vector<6x48xi32>
    %c8_i32_34 = arith.constant 8 : i32
    %64 = vector.broadcast %c8_i32_34 : i32 to vector<6x48xi32>
    %65 = arith.muli %63, %64 : vector<6x48xi32>
    %66 = arith.cmpi slt, %58, %65 : vector<6x48xi32>
    %67 = arith.andi %61, %66 : vector<6x48xi1>
    %68 = arith.extui %67 : vector<6x48xi1> to vector<6x48xi32>
    %69 = arith.sitofp %68 : vector<6x48xi32> to vector<6x48xf32>
    %cst_35 = arith.constant dense<0.000000e+00> : vector<6x32xf32>
    %70 = tpu.matmul %69, %56, %cst_35 {dimension_numbers = #tpu.dot_dimension_numbers<[1], [0], [0], [1], [0, 0, 1, 1], [], []>} : vector<6x48xf32>, vector<48x32xf32>, vector<6x32xf32> -> vector<6x32xf32>
    %c0_36 = arith.constant 0 : index
    %c0_37 = arith.constant 0 : index
    %71 = vector.load %arg13[%c0_36, %c0_37] : memref<32x128xf32, #tpu.memory_space<vmem>>, vector<32x128xf32>
    %cst_38 = arith.constant dense<0.000000e+00> : vector<6x128xf32>
    %72 = tpu.matmul %70, %71, %cst_38 {dimension_numbers = #tpu.dot_dimension_numbers<[1], [0], [0], [1], [0, 0, 1, 1], [], []>} : vector<6x32xf32>, vector<32x128xf32>, vector<6x128xf32> -> vector<6x128xf32>
    %c0_39 = arith.constant 0 : index
    %c0_40 = arith.constant 0 : index
    %73 = vector.load %arg14[%c0_39, %c0_40] : memref<1x128xf32, #tpu.memory_space<vmem>>, vector<1x128xf32>
    %74 = vector.broadcast %73 : vector<1x128xf32> to vector<6x128xf32>
    %75 = arith.addf %72, %74 : vector<6x128xf32>
    %c0_41 = arith.constant 0 : index
    %c0_42 = arith.constant 0 : index
    %76 = vector.load %arg15[%c0_41, %c0_42] : memref<6x128xf32, #tpu.memory_space<vmem>>, vector<6x128xf32>
    tpu.vector_store %arg15[%c0_41, %c0_42], %75 {strides = array<i32>} : memref<6x128xf32, #tpu.memory_space<vmem>>, vector<6x128xf32>,
    return
  }
}

</mosaic_0001>

<llo_original>
// kernel: tpu_custom_call.1
$region0: #{tpu_custom_call.1}
  #allocation0 [shape = 'u32[]', space=smem, size = 0x4, offset = 0x4, fixed_abs, tag = 'smem constant byte address 0x4 - core index']
  #allocation1 [shape = 'u32[144,128]{1,0:T(1,128)}', space=vmem, size = 0x12000, scoped, tag = 'internal scratch']
  #allocation2 [shape = 'f32[1,1]{1,0:T(1,128)S(6)}', space=smem, size = 0x200, scoped, tag = 'scoped memory for tpu_custom_call.1']
  %s0 = inlined_call_operand.vmem [shape: f32[48,1], index: 0, kind: input, shape index: {}]
  %s1 = inlined_call_operand.vmem [shape: f32[96,1], index: 1, kind: input, shape index: {}]
  %s2 = inlined_call_operand.vmem [shape: f32[96,2], index: 2, kind: input, shape index: {}]
  %s3 = inlined_call_operand.vmem [shape: s32[1,96], index: 3, kind: input, shape index: {}]
  %s4 = inlined_call_operand.<no memory space> [shape: f32[1,1], index: 4, kind: input, shape index: {}]
  %s5 = inlined_call_operand.vmem [shape: f32[1,32], index: 5, kind: input, shape index: {}]
  %s6 = inlined_call_operand.vmem [shape: f32[1,32], index: 6, kind: input, shape index: {}]
  %s7 = inlined_call_operand.vmem [shape: f32[2,32], index: 7, kind: input, shape index: {}]
  %s8 = inlined_call_operand.vmem [shape: f32[1,32], index: 8, kind: input, shape index: {}]
  %s9 = inlined_call_operand.vmem [shape: f32[32,32], index: 9, kind: input, shape index: {}]
  %s10 = inlined_call_operand.vmem [shape: f32[1,32], index: 10, kind: input, shape index: {}]
  %s11 = inlined_call_operand.vmem [shape: f32[32,32], index: 11, kind: input, shape index: {}]
  %s12 = inlined_call_operand.vmem [shape: f32[1,32], index: 12, kind: input, shape index: {}]
  %s13 = inlined_call_operand.vmem [shape: f32[32,128], index: 13, kind: input, shape index: {}]
  %s14 = inlined_call_operand.vmem [shape: f32[1,128], index: 14, kind: input, shape index: {}]
  %s15 = inlined_call_operand.hbm [shape: f32[6,128], index: 15, kind: output, shape index: {}]
  %s16 = sld [smem:[#allocation0]]
  $region70: #{tpu_custom_call.1} parent=0
    _
  %s18 = ssub.s32 1, %s16
  %s19 = scalar_select 0, %s18, %s16
  %20 = sst [smem:[#allocation2]] %s4
  $region1: #{tpu_custom_call.1} parent=0
    #allocation3 [shape = 'u8[4096]{0}', space=vmem, size = 0x1000, scoped, tag = 'output window, operand 0, single buffered']
    #allocation4 [shape = 's32[1]{0}', space=sflag, size = 0x4, scoped, tag = 'scoped memory for tpu_custom_call.1']
    %21 = vsyncpa [#allocation4], 0
    // Predicated region
    $region2: #{tpu_custom_call.1} parent=1 // pred_check
      _
    $region3: #{tpu_custom_call.1} parent=1 // pred_check_branch
      %23 = sbr.rel (0) target = $region5
    $region4: #{tpu_custom_call.1} parent=1 // pred_region
      _
    $region5: #{tpu_custom_call.1} parent=1 // pred_fallthru
      _
    // Predicated region
    $region6: #{tpu_custom_call.1} parent=1 // pred_check
      _
    $region7: #{tpu_custom_call.1} parent=1 // pred_check_branch
      %25 = sbr.rel (0) target = $region9
    $region8: #{tpu_custom_call.1} parent=1 // pred_region
      _
    $region9: #{tpu_custom_call.1} parent=1 // pred_fallthru
      _
    // Predicated region
    $region10: #{tpu_custom_call.1} parent=1 // pred_check
      _
    $region11: #{tpu_custom_call.1} parent=1 // pred_check_branch
      %27 = sbr.rel (0) target = $region13
    $region12: #{tpu_custom_call.1} parent=1 // pred_region
      _
    $region13: #{tpu_custom_call.1} parent=1 // pred_fallthru
      _
    // Predicated region
    $region14: #{tpu_custom_call.1} parent=1 // pred_check
      _
    $region15: #{tpu_custom_call.1} parent=1 // pred_check_branch
      %29 = sbr.rel (0) target = $region17
    $region16: #{tpu_custom_call.1} parent=1 // pred_region
      _
    $region17: #{tpu_custom_call.1} parent=1 // pred_fallthru
      _
    // Predicated region
    $region18: #{tpu_custom_call.1} parent=1 // pred_check
      _
    $region19: #{tpu_custom_call.1} parent=1 // pred_check_branch
      %31 = sbr.rel (0) target = $region21
    $region20: #{tpu_custom_call.1} parent=1 // pred_region
      _
    $region21: #{tpu_custom_call.1} parent=1 // pred_fallthru
      _
    // Predicated region
    $region22: #{tpu_custom_call.1} parent=1 // pred_check
      _
    $region23: #{tpu_custom_call.1} parent=1 // pred_check_branch
      %33 = sbr.rel (0) target = $region25
    $region24: #{tpu_custom_call.1} parent=1 // pred_region
      _
    $region25: #{tpu_custom_call.1} parent=1 // pred_fallthru
      _
    // Predicated region
    $region26: #{tpu_custom_call.1} parent=1 // pred_check
      _
    $region27: #{tpu_custom_call.1} parent=1 // pred_check_branch
      %35 = sbr.rel (0) target = $region29
    $region28: #{tpu_custom_call.1} parent=1 // pred_region
      _
    $region29: #{tpu_custom_call.1} parent=1 // pred_fallthru
      _
    // Predicated region
    $region30: #{tpu_custom_call.1} parent=1 // pred_check
      _
    $region31: #{tpu_custom_call.1} parent=1 // pred_check_branch
      %37 = sbr.rel (0) target = $region33
    $region32: #{tpu_custom_call.1} parent=1 // pred_region
      _
    $region33: #{tpu_custom_call.1} parent=1 // pred_fallthru
      _
    // Predicated region
    $region34: #{tpu_custom_call.1} parent=1 // pred_check
      _
    $region35: #{tpu_custom_call.1} parent=1 // pred_check_branch
      %39 = sbr.rel (0) target = $region37
    $region36: #{tpu_custom_call.1} parent=1 // pred_region
      _
    $region37: #{tpu_custom_call.1} parent=1 // pred_fallthru
      _
    // Predicated region
    $region38: #{tpu_custom_call.1} parent=1 // pred_check
      _
    $region39: #{tpu_custom_call.1} parent=1 // pred_check_branch
      %41 = sbr.rel (0) target = $region41
    $region40: #{tpu_custom_call.1} parent=1 // pred_region
      _
    $region41: #{tpu_custom_call.1} parent=1 // pred_fallthru
      _
    // Predicated region
    $region42: #{tpu_custom_call.1} parent=1 // pred_check
      _
    $region43: #{tpu_custom_call.1} parent=1 // pred_check_branch
      %43 = sbr.rel (0) target = $region45
    $region44: #{tpu_custom_call.1} parent=1 // pred_region
      _
    $region45: #{tpu_custom_call.1} parent=1 // pred_fallthru
      _
    // Predicated region
    $region46: #{tpu_custom_call.1} parent=1 // pred_check
      _
    $region47: #{tpu_custom_call.1} parent=1 // pred_check_branch
      %45 = sbr.rel (0) target = $region49
    $region48: #{tpu_custom_call.1} parent=1 // pred_region
      _
    $region49: #{tpu_custom_call.1} parent=1 // pred_fallthru
      _
    // Predicated region
    $region50: #{tpu_custom_call.1} parent=1 // pred_check
      _
    $region51: #{tpu_custom_call.1} parent=1 // pred_check_branch
      %47 = sbr.rel (0) target = $region53
    $region52: #{tpu_custom_call.1} parent=1 // pred_region
      _
    $region53: #{tpu_custom_call.1} parent=1 // pred_fallthru
      _
    // Predicated region
    $region54: #{tpu_custom_call.1} parent=1 // pred_check
      _
    $region55: #{tpu_custom_call.1} parent=1 // pred_check_branch
      %49 = sbr.rel (0) target = $region57
    $region56: #{tpu_custom_call.1} parent=1 // pred_region
      _
    $region57: #{tpu_custom_call.1} parent=1 // pred_fallthru
      _
    // Predicated region
    $region58: #{tpu_custom_call.1} parent=1 // pred_check
      _
    $region59: #{tpu_custom_call.1} parent=1 // pred_check_branch
      %51 = sbr.rel (0) target = $region61
    $region60: #{tpu_custom_call.1} parent=1 // pred_region
      _
    $region61: #{tpu_custom_call.1} parent=1 // pred_fallthru
      _
    %v52 = vld [vmem:[%s5] sm:$0x1]
    %v53 = vld [vmem:[%s6] sm:$0x1]
    %v54 = vld [vmem:[%s0] sm:$0xff]
    %v55 = vld [vmem:[%s0 + $0x8] sm:$0xff]
    %v56 = vld [vmem:[%s0 + $0x10] sm:$0xff]
    %v57 = vld [vmem:[%s0 + $0x18] sm:$0xff]
    %v58 = vld [vmem:[%s0 + $0x20] sm:$0xff]
    %v59 = vld [vmem:[%s0 + $0x28] sm:$0xff]
    %61 = vset.pattern.permute.xlu0 0
    %62 = vperm.xlu0 %61, %v54
    %v63 = vpop.permute.xlu0 %62
    %66 = vset.pattern.permute.xlu0 0
    %67 = vperm.xlu0 %66, %v55
    %v68 = vpop.permute.xlu0 %67
    %71 = vset.pattern.permute.xlu0 0
    %72 = vperm.xlu0 %71, %v56
    %v73 = vpop.permute.xlu0 %72
    %76 = vset.pattern.permute.xlu0 0
    %77 = vperm.xlu0 %76, %v57
    %v78 = vpop.permute.xlu0 %77
    %81 = vset.pattern.permute.xlu0 0
    %82 = vperm.xlu0 %81, %v58
    %v83 = vpop.permute.xlu0 %82
    %86 = vset.pattern.permute.xlu0 0
    %87 = vperm.xlu0 %86, %v59
    %v88 = vpop.permute.xlu0 %87
    %v91 = vlaneseq
    %v92 = vshrl.u32 %v91, 7
    %v93 = vsub.s32 0, %v92
    %v94 = vrot.slane %v52, %v93
    %v96 = vmul.f32 %v63, %v94
    %v97 = vmul.f32 %v68, %v94
    %v98 = vmul.f32 %v73, %v94
    %v99 = vmul.f32 %v78, %v94
    %v100 = vmul.f32 %v83, %v94
    %v101 = vmul.f32 %v88, %v94
    %v103 = vlaneseq
    %v104 = vshrl.u32 %v103, 7
    %v105 = vsub.s32 0, %v104
    %v106 = vrot.slane %v53, %v105
    %v108 = vadd.f32 %v96, %v106
    %v109 = vadd.f32 %v97, %v106
    %v110 = vadd.f32 %v98, %v106
    %v111 = vadd.f32 %v99, %v106
    %v112 = vadd.f32 %v100, %v106
    %v113 = vadd.f32 %v101, %v106
    %v114 = vld [vmem:[%s2] sm:$0xff]
    %v115 = vld [vmem:[%s2 + $0x8] sm:$0xff]
    %v116 = vld [vmem:[%s2 + $0x10] sm:$0xff]
    %v117 = vld [vmem:[%s2 + $0x18] sm:$0xff]
    %v118 = vld [vmem:[%s2 + $0x20] sm:$0xff]
    %v119 = vld [vmem:[%s2 + $0x28] sm:$0xff]
    %v120 = vld [vmem:[%s2 + $0x30] sm:$0xff]
    %v121 = vld [vmem:[%s2 + $0x38] sm:$0xff]
    %v122 = vld [vmem:[%s2 + $0x40] sm:$0xff]
    %v123 = vld [vmem:[%s2 + $0x48] sm:$0xff]
    %v124 = vld [vmem:[%s2 + $0x50] sm:$0xff]
    %v125 = vld [vmem:[%s2 + $0x58] sm:$0xff]
    %v126 = vld [vmem:[%s7] sm:$0x1]
    %128 = vset.pattern.permute.xlu0 0
    %129 = vperm.xlu0 %128, %v114
    %v130 = vpop.permute.xlu0 %129
    %133 = vset.pattern.permute.xlu0 0
    %134 = vperm.xlu0 %133, %v115
    %v135 = vpop.permute.xlu0 %134
    %138 = vset.pattern.permute.xlu0 0
    %139 = vperm.xlu0 %138, %v116
    %v140 = vpop.permute.xlu0 %139
    %143 = vset.pattern.permute.xlu0 0
    %144 = vperm.xlu0 %143, %v117
    %v145 = vpop.permute.xlu0 %144
    %148 = vset.pattern.permute.xlu0 0
    %149 = vperm.xlu0 %148, %v118
    %v150 = vpop.permute.xlu0 %149
    %153 = vset.pattern.permute.xlu0 0
    %154 = vperm.xlu0 %153, %v119
    %v155 = vpop.permute.xlu0 %154
    %158 = vset.pattern.permute.xlu0 0
    %159 = vperm.xlu0 %158, %v120
    %v160 = vpop.permute.xlu0 %159
    %163 = vset.pattern.permute.xlu0 0
    %164 = vperm.xlu0 %163, %v121
    %v165 = vpop.permute.xlu0 %164
    %168 = vset.pattern.permute.xlu0 0
    %169 = vperm.xlu0 %168, %v122
    %v170 = vpop.permute.xlu0 %169
    %173 = vset.pattern.permute.xlu0 0
    %174 = vperm.xlu0 %173, %v123
    %v175 = vpop.permute.xlu0 %174
    %178 = vset.pattern.permute.xlu0 0
    %179 = vperm.xlu0 %178, %v124
    %v180 = vpop.permute.xlu0 %179
    %183 = vset.pattern.permute.xlu0 0
    %184 = vperm.xlu0 %183, %v125
    %v185 = vpop.permute.xlu0 %184
    %v187 = vlaneseq
    %v188 = vshrl.u32 %v187, 7
    %v189 = vsub.s32 0, %v188
    %v190 = vrot.slane %v126, %v189
    %v191 = vmul.f32 %v130, %v190
    %v192 = vmul.f32 %v135, %v190
    %v193 = vmul.f32 %v140, %v190
    %v194 = vmul.f32 %v145, %v190
    %v195 = vmul.f32 %v150, %v190
    %v196 = vmul.f32 %v155, %v190
    %v197 = vmul.f32 %v160, %v190
    %v198 = vmul.f32 %v165, %v190
    %v199 = vmul.f32 %v170, %v190
    %v200 = vmul.f32 %v175, %v190
    %v201 = vmul.f32 %v180, %v190
    %v202 = vmul.f32 %v185, %v190
    %v203 = vld [vmem:[%s7 + $0x1] sm:$0x1]
    %204 = vset.pattern.permute.xlu0 1
    %205 = vperm.xlu0 %204, %v114
    %v206 = vpop.permute.xlu0 %205
    %208 = vset.pattern.permute.xlu0 1
    %209 = vperm.xlu0 %208, %v115
    %v210 = vpop.permute.xlu0 %209
    %212 = vset.pattern.permute.xlu0 1
    %213 = vperm.xlu0 %212, %v116
    %v214 = vpop.permute.xlu0 %213
    %216 = vset.pattern.permute.xlu0 1
    %217 = vperm.xlu0 %216, %v117
    %v218 = vpop.permute.xlu0 %217
    %220 = vset.pattern.permute.xlu0 1
    %221 = vperm.xlu0 %220, %v118
    %v222 = vpop.permute.xlu0 %221
    %224 = vset.pattern.permute.xlu0 1
    %225 = vperm.xlu0 %224, %v119
    %v226 = vpop.permute.xlu0 %225
    %228 = vset.pattern.permute.xlu0 1
    %229 = vperm.xlu0 %228, %v120
    %v230 = vpop.permute.xlu0 %229
    %232 = vset.pattern.permute.xlu0 1
    %233 = vperm.xlu0 %232, %v121
    %v234 = vpop.permute.xlu0 %233
    %236 = vset.pattern.permute.xlu0 1
    %237 = vperm.xlu0 %236, %v122
    %v238 = vpop.permute.xlu0 %237
    %240 = vset.pattern.permute.xlu0 1
    %241 = vperm.xlu0 %240, %v123
    %v242 = vpop.permute.xlu0 %241
    %244 = vset.pattern.permute.xlu0 1
    %245 = vperm.xlu0 %244, %v124
    %v246 = vpop.permute.xlu0 %245
    %248 = vset.pattern.permute.xlu0 1
    %249 = vperm.xlu0 %248, %v125
    %v250 = vpop.permute.xlu0 %249
    %v252 = vlaneseq
    %v253 = vshrl.u32 %v252, 7
    %v254 = vsub.s32 0, %v253
    %v255 = vrot.slane %v203, %v254
    %v256 = vmul.f32 %v206, %v255
    %v257 = vmul.f32 %v210, %v255
    %v258 = vmul.f32 %v214, %v255
    %v259 = vmul.f32 %v218, %v255
    %v260 = vmul.f32 %v222, %v255
    %v261 = vmul.f32 %v226, %v255
    %v262 = vmul.f32 %v230, %v255
    %v263 = vmul.f32 %v234, %v255
    %v264 = vmul.f32 %v238, %v255
    %v265 = vmul.f32 %v242, %v255
    %v266 = vmul.f32 %v246, %v255
    %v267 = vmul.f32 %v250, %v255
    %v268 = vadd.f32 %v191, %v256
    %v269 = vadd.f32 %v192, %v257
    %v270 = vadd.f32 %v193, %v258
    %v271 = vadd.f32 %v194, %v259
    %v272 = vadd.f32 %v195, %v260
    %v273 = vadd.f32 %v196, %v261
    %v274 = vadd.f32 %v197, %v262
    %v275 = vadd.f32 %v198, %v263
    %v276 = vadd.f32 %v199, %v264
    %v277 = vadd.f32 %v200, %v265
    %v278 = vadd.f32 %v201, %v266
    %v279 = vadd.f32 %v202, %v267
    %v280 = vld [vmem:[%s8] sm:$0x1]
    %v282 = vlaneseq
    %v283 = vshrl.u32 %v282, 7
    %v284 = vsub.s32 0, %v283
    %v285 = vrot.slane %v280, %v284
    %v287 = vadd.f32 %v268, %v285
    %v288 = vadd.f32 %v269, %v285
    %v289 = vadd.f32 %v270, %v285
    %v290 = vadd.f32 %v271, %v285
    %v291 = vadd.f32 %v272, %v285
    %v292 = vadd.f32 %v273, %v285
    %v293 = vadd.f32 %v274, %v285
    %v294 = vadd.f32 %v275, %v285
    %v295 = vadd.f32 %v276, %v285
    %v296 = vadd.f32 %v277, %v285
    %v297 = vadd.f32 %v278, %v285
    %v298 = vadd.f32 %v279, %v285
    %v299 = vld [vmem:[%s1] sm:$0xff]
    %v300 = vld [vmem:[%s1 + $0x8] sm:$0xff]
    %v301 = vld [vmem:[%s1 + $0x10] sm:$0xff]
    %v302 = vld [vmem:[%s1 + $0x18] sm:$0xff]
    %v303 = vld [vmem:[%s1 + $0x20] sm:$0xff]
    %v304 = vld [vmem:[%s1 + $0x28] sm:$0xff]
    %v305 = vld [vmem:[%s1 + $0x30] sm:$0xff]
    %v306 = vld [vmem:[%s1 + $0x38] sm:$0xff]
    %v307 = vld [vmem:[%s1 + $0x40] sm:$0xff]
    %v308 = vld [vmem:[%s1 + $0x48] sm:$0xff]
    %v309 = vld [vmem:[%s1 + $0x50] sm:$0xff]
    %v310 = vld [vmem:[%s1 + $0x58] sm:$0xff]
    %312 = vset.pattern.permute.xlu0 0
    %313 = vperm.xlu0 %312, %v299
    %v314 = vpop.permute.xlu0 %313
    %317 = vset.pattern.permute.xlu0 0
    %318 = vperm.xlu0 %317, %v300
    %v319 = vpop.permute.xlu0 %318
    %322 = vset.pattern.permute.xlu0 0
    %323 = vperm.xlu0 %322, %v301
    %v324 = vpop.permute.xlu0 %323
    %327 = vset.pattern.permute.xlu0 0
    %328 = vperm.xlu0 %327, %v302
    %v329 = vpop.permute.xlu0 %328
    %332 = vset.pattern.permute.xlu0 0
    %333 = vperm.xlu0 %332, %v303
    %v334 = vpop.permute.xlu0 %333
    %337 = vset.pattern.permute.xlu0 0
    %338 = vperm.xlu0 %337, %v304
    %v339 = vpop.permute.xlu0 %338
    %342 = vset.pattern.permute.xlu0 0
    %343 = vperm.xlu0 %342, %v305
    %v344 = vpop.permute.xlu0 %343
    %347 = vset.pattern.permute.xlu0 0
    %348 = vperm.xlu0 %347, %v306
    %v349 = vpop.permute.xlu0 %348
    %352 = vset.pattern.permute.xlu0 0
    %353 = vperm.xlu0 %352, %v307
    %v354 = vpop.permute.xlu0 %353
    %357 = vset.pattern.permute.xlu0 0
    %358 = vperm.xlu0 %357, %v308
    %v359 = vpop.permute.xlu0 %358
    %362 = vset.pattern.permute.xlu0 0
    %363 = vperm.xlu0 %362, %v309
    %v364 = vpop.permute.xlu0 %363
    %367 = vset.pattern.permute.xlu0 0
    %368 = vperm.xlu0 %367, %v310
    %v369 = vpop.permute.xlu0 %368
    %v371 = vmul.f32 %v314, %v94
    %v372 = vmul.f32 %v319, %v94
    %v373 = vmul.f32 %v324, %v94
    %v374 = vmul.f32 %v329, %v94
    %v375 = vmul.f32 %v334, %v94
    %v376 = vmul.f32 %v339, %v94
    %v377 = vmul.f32 %v344, %v94
    %v378 = vmul.f32 %v349, %v94
    %v379 = vmul.f32 %v354, %v94
    %v380 = vmul.f32 %v359, %v94
    %v381 = vmul.f32 %v364, %v94
    %v382 = vmul.f32 %v369, %v94
    %v383 = vadd.f32 %v371, %v106
    %v384 = vadd.f32 %v372, %v106
    %v385 = vadd.f32 %v373, %v106
    %v386 = vadd.f32 %v374, %v106
    %v387 = vadd.f32 %v375, %v106
    %v388 = vadd.f32 %v376, %v106
    %v389 = vadd.f32 %v377, %v106
    %v390 = vadd.f32 %v378, %v106
    %v391 = vadd.f32 %v379, %v106
    %v392 = vadd.f32 %v380, %v106
    %v393 = vadd.f32 %v381, %v106
    %v394 = vadd.f32 %v382, %v106
    %v395 = vadd.f32 %v383, %v287
    %v396 = vadd.f32 %v384, %v288
    %v397 = vadd.f32 %v385, %v289
    %v398 = vadd.f32 %v386, %v290
    %v399 = vadd.f32 %v387, %v291
    %v400 = vadd.f32 %v388, %v292
    %v401 = vadd.f32 %v389, %v293
    %v402 = vadd.f32 %v390, %v294
    %v403 = vadd.f32 %v391, %v295
    %v404 = vadd.f32 %v392, %v296
    %v405 = vadd.f32 %v393, %v297
    %v406 = vadd.f32 %v394, %v298
    %v407 = vmax.f32 %v395, 0.0
    %v408 = vmax.f32 %v396, 0.0
    %v409 = vmax.f32 %v397, 0.0
    %v410 = vmax.f32 %v398, 0.0
    %v411 = vmax.f32 %v399, 0.0
    %v412 = vmax.f32 %v400, 0.0
    %v413 = vmax.f32 %v401, 0.0
    %v414 = vmax.f32 %v402, 0.0
    %v415 = vmax.f32 %v403, 0.0
    %v416 = vmax.f32 %v404, 0.0
    %v417 = vmax.f32 %v405, 0.0
    %v418 = vmax.f32 %v406, 0.0
    %v419 = vlaneseq
    %v420 = vshrl.u32 %v419, 7
    %v421 = vadd.s32 %v420, 8
    %v422 = vadd.s32 %v420, 16
    %v423 = vadd.s32 %v420, 24
    %v424 = vadd.s32 %v420, 32
    %v425 = vadd.s32 %v420, 40
    %v426 = vld [vmem:[%s3] sm:$0x1]
    %v427 = vlaneseq
    %v428 = vshrl.u32 %v427, 7
    %v429 = vsub.s32 0, %v428
    %v430 = vrot.slane %v426, %v429
    %vm431 = vcmp.eq.s32.totalorder %v420, %v430
    %vm432 = vcmp.eq.s32.totalorder %v421, %v430
    %vm433 = vcmp.eq.s32.totalorder %v422, %v430
    %vm434 = vcmp.eq.s32.totalorder %v423, %v430
    %vm435 = vcmp.eq.s32.totalorder %v424, %v430
    %vm436 = vcmp.eq.s32.totalorder %v425, %v430
    %v437 = vsel %vm431, 1, 0
    %v438 = vsel %vm432, 1, 0
    %v439 = vsel %vm433, 1, 0
    %v440 = vsel %vm434, 1, 0
    %v441 = vsel %vm435, 1, 0
    %v442 = vsel %vm436, 1, 0
    %v443 = vcvt.s32.f32 %v437
    %v444 = vcvt.s32.f32 %v438
    %v445 = vcvt.s32.f32 %v439
    %v446 = vcvt.s32.f32 %v440
    %v447 = vcvt.s32.f32 %v441
    %v448 = vcvt.s32.f32 %v442
    %vm449 = vcmask 785408
    %v451 = vsel %vm449, %v443, 0
    %v454 = vsel %vm449, %v444, 0
    %v457 = vsel %vm449, %v445, 0
    %v460 = vsel %vm449, %v446, 0
    %v463 = vsel %vm449, %v447, 0
    %v466 = vsel %vm449, %v448, 0
    %468 = vmatprep.subr.mxu0 0.0
    %469 = vmatpush1.msra.mxu0 %v407
    %470 = vmatprep.subr.mxu0 0.0
    %471 = vmatpush1.msra.mxu0 %v408
    %472 = vmatprep.subr.mxu0 0.0
    %473 = vmatpush1.msra.mxu0 %v409
    %474 = vmatprep.subr.mxu0 0.0
    %475 = vmatpush1.msra.mxu0 %v410
    %476 = vmatprep.subr.mxu0 0.0
    %477 = vmatpush1.msra.mxu0 %v411
    %478 = vmatprep.subr.mxu0 0.0
    %479 = vmatpush1.msra.mxu0 %v412
    %480 = vmatprep.subr.mxu0 0.0
    %481 = vmatpush1.msra.mxu0 %v413
    %482 = vmatprep.subr.mxu0 0.0
    %483 = vmatpush1.msra.mxu0 %v414
    %484 = vmatprep.subr.mxu0 0.0
    %485 = vmatpush1.msra.mxu0 %v415
    %486 = vmatprep.subr.mxu0 0.0
    %487 = vmatpush1.msra.mxu0 %v416
    %488 = vmatprep.subr.mxu0 0.0
    %489 = vmatpush1.msra.mxu0 %v417
    %490 = vmatprep.subr.mxu0 0.0
    %491 = vmatpush1.msra.mxu0 %v418
    %492 = vmatprep.subr.mxu0 0.0
    %493 = vmatpush1.msra.mxu0 0.0
    %494 = vmatprep.subr.mxu0 0.0
    %495 = vmatpush1.msra.mxu0 0.0
    %496 = vmatprep.subr.mxu0 0.0
    %497 = vmatpush1.msra.mxu0 0.0
    %498 = vmatprep.subr.mxu0 0.0
    %499 = vmatpush1.msra.mxu0 0.0
    %500 = vmatprep.subr.mxu0 0.0
    %501 = vmatpush1.msra.mxu0 0.0
    %502 = vmatprep.subr.mxu0 0.0
    %503 = vmatpush1.msra.mxu0 0.0
    %504 = vmatprep.subr.mxu0 0.0
    %505 = vmatpush1.msra.mxu0 0.0
    %506 = vmatprep.subr.mxu0 0.0
    %507 = vmatpush1.msra.mxu0 0.0
    %508 = vmatprep.subr.mxu0 0.0
    %509 = vmatpush1.msra.mxu0 0.0
    %510 = vmatprep.subr.mxu0 0.0
    %511 = vmatpush1.msra.mxu0 0.0
    %512 = vmatprep.subr.mxu0 0.0
    %513 = vmatpush1.msra.mxu0 0.0
    %514 = vmatprep.subr.mxu0 0.0
    %515 = vmatpush1.msra.mxu0 0.0
    %516 = vmatprep.subr.mxu0 0.0
    %517 = vmatpush1.msra.mxu0 0.0
    %518 = vmatprep.subr.mxu0 0.0
    %519 = vmatpush1.msra.mxu0 0.0
    %520 = vmatprep.subr.mxu0 0.0
    %521 = vmatpush1.msra.mxu0 0.0
    %522 = vmatprep.subr.mxu0 0.0
    %523 = vmatpush1.msra.mxu0 0.0
    %524 = vmatprep.subr.mxu0 0.0
    %525 = vmatpush1.msra.mxu0 0.0
    %526 = vmatprep.subr.mxu0 0.0
    %527 = vmatpush1.msra.mxu0 0.0
    %528 = vmatprep.subr.mxu0 0.0
    %529 = vmatpush1.msra.mxu0 0.0
    %530 = vmatprep.subr.mxu0 0.0
    %531 = vmatpush1.msra.mxu0 0.0
    %532 = vmatprep.mubr.f32.mxu0 0.0
    %533 = vmatmul.mubr.f32.gmra.mrb[0].mxu0 %v451
    %v534 = vpop.f32.mrb[0].mxu0
    %v535 = vadd.f32 0.0, %v534
    %v536 = vpop.f32.mrb[0].mxu0
    %537 = vmatprep.mubr.f32.mxu0 0.0
    %538 = vmatmul.mubr.f32.gmra.mrb[0].mxu0 %v454
    %v539 = vpop.f32.mrb[0].mxu0
    %v540 = vadd.f32 0.0, %v539
    %v541 = vpop.f32.mrb[0].mxu0
    %542 = vmatprep.mubr.f32.mxu0 0.0
    %543 = vmatmul.mubr.f32.gmra.mrb[0].mxu0 %v457
    %v544 = vpop.f32.mrb[0].mxu0
    %v545 = vadd.f32 0.0, %v544
    %v546 = vpop.f32.mrb[0].mxu0
    %547 = vmatprep.mubr.f32.mxu0 0.0
    %548 = vmatmul.mubr.f32.gmra.mrb[0].mxu0 %v460
    %v549 = vpop.f32.mrb[0].mxu0
    %v550 = vadd.f32 0.0, %v549
    %v551 = vpop.f32.mrb[0].mxu0
    %552 = vmatprep.mubr.f32.mxu0 0.0
    %553 = vmatmul.mubr.f32.gmra.mrb[0].mxu0 %v463
    %v554 = vpop.f32.mrb[0].mxu0
    %v555 = vadd.f32 0.0, %v554
    %v556 = vpop.f32.mrb[0].mxu0
    %557 = vmatprep.mubr.f32.mxu0 0.0
    %558 = vmatmul.mubr.f32.gmra.mrb[0].mxu0 %v466
    %v559 = vpop.f32.mrb[0].mxu0
    %v560 = vadd.f32 0.0, %v559
    %v561 = vpop.f32.mrb[0].mxu0
    %562 = vdwg.mxu0
    %s563 = sld [smem:[#allocation2]]
    %s564 = sadd.f32 %s563, 1.0
    %v565 = vstv %s564
    %v566 = vmul.f32 %v565, %v108
    %v567 = vmul.f32 %v565, %v109
    %v568 = vmul.f32 %v565, %v110
    %v569 = vmul.f32 %v565, %v111
    %v570 = vmul.f32 %v565, %v112
    %v571 = vmul.f32 %v565, %v113
    %v572 = vadd.f32 %v566, %v535
    %v573 = vadd.f32 %v567, %v540
    %v574 = vadd.f32 %v568, %v545
    %v575 = vadd.f32 %v569, %v550
    %v576 = vadd.f32 %v570, %v555
    %v577 = vadd.f32 %v571, %v560
    %v578 = vld [vmem:[%s9] sm:$0xff]
    %v579 = vld [vmem:[%s9 + $0x8] sm:$0xff]
    %v580 = vld [vmem:[%s9 + $0x10] sm:$0xff]
    %v581 = vld [vmem:[%s9 + $0x18] sm:$0xff]
    %v582 = vld [vmem:[%s10] sm:$0x1]
    %v584 = vlaneseq
    %v585 = vshrl.u32 %v584, 7
    %v586 = vsub.s32 0, %v585
    %v587 = vrot.slane %v582, %v586
    %vm589 = vcmask 261120
    %v591 = vsel %vm589, %v572, 0
    %v594 = vsel %vm589, %v573, 0
    %v597 = vsel %vm589, %v574, 0
    %v600 = vsel %vm589, %v575, 0
    %v603 = vsel %vm589, %v576, 0
    %v606 = vsel %vm589, %v577, 0
    %608 = vmatprep.subr.mxu0 0.0
    %609 = vmatpush1.msra.mxu0 %v578
    %610 = vmatprep.subr.mxu0 0.0
    %611 = vmatpush1.msra.mxu0 %v579
    %612 = vmatprep.subr.mxu0 0.0
    %613 = vmatpush1.msra.mxu0 %v580
    %614 = vmatprep.subr.mxu0 0.0
    %615 = vmatpush1.msra.mxu0 %v581
    %616 = vmatprep.subr.mxu0 0.0
    %617 = vmatpush1.msra.mxu0 0.0
    %618 = vmatprep.subr.mxu0 0.0
    %619 = vmatpush1.msra.mxu0 0.0
    %620 = vmatprep.subr.mxu0 0.0
    %621 = vmatpush1.msra.mxu0 0.0
    %622 = vmatprep.subr.mxu0 0.0
    %623 = vmatpush1.msra.mxu0 0.0
    %624 = vmatprep.subr.mxu0 0.0
    %625 = vmatpush1.msra.mxu0 0.0
    %626 = vmatprep.subr.mxu0 0.0
    %627 = vmatpush1.msra.mxu0 0.0
    %628 = vmatprep.subr.mxu0 0.0
    %629 = vmatpush1.msra.mxu0 0.0
    %630 = vmatprep.subr.mxu0 0.0
    %631 = vmatpush1.msra.mxu0 0.0
    %632 = vmatprep.subr.mxu0 0.0
    %633 = vmatpush1.msra.mxu0 0.0
    %634 = vmatprep.subr.mxu0 0.0
    %635 = vmatpush1.msra.mxu0 0.0
    %636 = vmatprep.subr.mxu0 0.0
    %637 = vmatpush1.msra.mxu0 0.0
    %638 = vmatprep.subr.mxu0 0.0
    %639 = vmatpush1.msra.mxu0 0.0
    %640 = vmatprep.subr.mxu0 0.0
    %641 = vmatpush1.msra.mxu0 0.0
    %642 = vmatprep.subr.mxu0 0.0
    %643 = vmatpush1.msra.mxu0 0.0
    %644 = vmatprep.subr.mxu0 0.0
    %645 = vmatpush1.msra.mxu0 0.0
    %646 = vmatprep.subr.mxu0 0.0
    %647 = vmatpush1.msra.mxu0 0.0
    %648 = vmatprep.subr.mxu0 0.0
    %649 = vmatpush1.msra.mxu0 0.0
    %650 = vmatprep.subr.mxu0 0.0
    %651 = vmatpush1.msra.mxu0 0.0
    %652 = vmatprep.subr.mxu0 0.0
    %653 = vmatpush1.msra.mxu0 0.0
    %654 = vmatprep.subr.mxu0 0.0
    %655 = vmatpush1.msra.mxu0 0.0
    %656 = vmatprep.subr.mxu0 0.0
    %657 = vmatpush1.msra.mxu0 0.0
    %658 = vmatprep.subr.mxu0 0.0
    %659 = vmatpush1.msra.mxu0 0.0
    %660 = vmatprep.subr.mxu0 0.0
    %661 = vmatpush1.msra.mxu0 0.0
    %662 = vmatprep.subr.mxu0 0.0
    %663 = vmatpush1.msra.mxu0 0.0
    %664 = vmatprep.subr.mxu0 0.0
    %665 = vmatpush1.msra.mxu0 0.0
    %666 = vmatprep.subr.mxu0 0.0
    %667 = vmatpush1.msra.mxu0 0.0
    %668 = vmatprep.subr.mxu0 0.0
    %669 = vmatpush1.msra.mxu0 0.0
    %670 = vmatprep.subr.mxu0 0.0
    %671 = vmatpush1.msra.mxu0 0.0
    %672 = vmatprep.mubr.f32.mxu0 0.0
    %673 = vmatmul.mubr.f32.gmra.mrb[0].mxu0 %v591
    %v674 = vpop.f32.mrb[0].mxu0
    %v675 = vadd.f32 %v587, %v674
    %v676 = vpop.f32.mrb[0].mxu0
    %677 = vmatprep.mubr.f32.mxu0 0.0
    %678 = vmatmul.mubr.f32.gmra.mrb[0].mxu0 %v594
    %v679 = vpop.f32.mrb[0].mxu0
    %v680 = vadd.f32 %v587, %v679
    %v681 = vpop.f32.mrb[0].mxu0
    %682 = vmatprep.mubr.f32.mxu0 0.0
    %683 = vmatmul.mubr.f32.gmra.mrb[0].mxu0 %v597
    %v684 = vpop.f32.mrb[0].mxu0
    %v685 = vadd.f32 %v587, %v684
    %v686 = vpop.f32.mrb[0].mxu0
    %687 = vmatprep.mubr.f32.mxu0 0.0
    %688 = vmatmul.mubr.f32.gmra.mrb[0].mxu0 %v600
    %v689 = vpop.f32.mrb[0].mxu0
    %v690 = vadd.f32 %v587, %v689
    %v691 = vpop.f32.mrb[0].mxu0
    %692 = vmatprep.mubr.f32.mxu0 0.0
    %693 = vmatmul.mubr.f32.gmra.mrb[0].mxu0 %v603
    %v694 = vpop.f32.mrb[0].mxu0
    %v695 = vadd.f32 %v587, %v694
    %v696 = vpop.f32.mrb[0].mxu0
    %697 = vmatprep.mubr.f32.mxu0 0.0
    %698 = vmatmul.mubr.f32.gmra.mrb[0].mxu0 %v606
    %v699 = vpop.f32.mrb[0].mxu0
    %v700 = vadd.f32 %v587, %v699
    %v701 = vpop.f32.mrb[0].mxu0
    %702 = vdwg.mxu0
    %v703 = vmax.f32 %v675, 0.0
    %v704 = vmax.f32 %v680, 0.0
    %v705 = vmax.f32 %v685, 0.0
    %v706 = vmax.f32 %v690, 0.0
    %v707 = vmax.f32 %v695, 0.0
    %v708 = vmax.f32 %v700, 0.0
    %v709 = vld [vmem:[%s11] sm:$0xff]
    %v710 = vld [vmem:[%s11 + $0x8] sm:$0xff]
    %v711 = vld [vmem:[%s11 + $0x10] sm:$0xff]
    %v712 = vld [vmem:[%s11 + $0x18] sm:$0xff]
    %v713 = vld [vmem:[%s12] sm:$0x1]
    %v715 = vlaneseq
    %v716 = vshrl.u32 %v715, 7
    %v717 = vsub.s32 0, %v716
    %v718 = vrot.slane %v713, %v717
    %v721 = vsel %vm589, %v703, 0
    %v724 = vsel %vm589, %v704, 0
    %v727 = vsel %vm589, %v705, 0
    %v730 = vsel %vm589, %v706, 0
    %v733 = vsel %vm589, %v707, 0
    %v736 = vsel %vm589, %v708, 0
    %738 = vmatprep.subr.mxu0 0.0
    %739 = vmatpush1.msra.mxu0 %v709
    %740 = vmatprep.subr.mxu0 0.0
    %741 = vmatpush1.msra.mxu0 %v710
    %742 = vmatprep.subr.mxu0 0.0
    %743 = vmatpush1.msra.mxu0 %v711
    %744 = vmatprep.subr.mxu0 0.0
    %745 = vmatpush1.msra.mxu0 %v712
    %746 = vmatprep.subr.mxu0 0.0
    %747 = vmatpush1.msra.mxu0 0.0
    %748 = vmatprep.subr.mxu0 0.0
    %749 = vmatpush1.msra.mxu0 0.0
    %750 = vmatprep.subr.mxu0 0.0
    %751 = vmatpush1.msra.mxu0 0.0
    %752 = vmatprep.subr.mxu0 0.0
    %753 = vmatpush1.msra.mxu0 0.0
    %754 = vmatprep.subr.mxu0 0.0
    %755 = vmatpush1.msra.mxu0 0.0
    %756 = vmatprep.subr.mxu0 0.0
    %757 = vmatpush1.msra.mxu0 0.0
    %758 = vmatprep.subr.mxu0 0.0
    %759 = vmatpush1.msra.mxu0 0.0
    %760 = vmatprep.subr.mxu0 0.0
    %761 = vmatpush1.msra.mxu0 0.0
    %762 = vmatprep.subr.mxu0 0.0
    %763 = vmatpush1.msra.mxu0 0.0
    %764 = vmatprep.subr.mxu0 0.0
    %765 = vmatpush1.msra.mxu0 0.0
    %766 = vmatprep.subr.mxu0 0.0
    %767 = vmatpush1.msra.mxu0 0.0
    %768 = vmatprep.subr.mxu0 0.0
    %769 = vmatpush1.msra.mxu0 0.0
    %770 = vmatprep.subr.mxu0 0.0
    %771 = vmatpush1.msra.mxu0 0.0
    %772 = vmatprep.subr.mxu0 0.0
    %773 = vmatpush1.msra.mxu0 0.0
    %774 = vmatprep.subr.mxu0 0.0
    %775 = vmatpush1.msra.mxu0 0.0
    %776 = vmatprep.subr.mxu0 0.0
    %777 = vmatpush1.msra.mxu0 0.0
    %778 = vmatprep.subr.mxu0 0.0
    %779 = vmatpush1.msra.mxu0 0.0
    %780 = vmatprep.subr.mxu0 0.0
    %781 = vmatpush1.msra.mxu0 0.0
    %782 = vmatprep.subr.mxu0 0.0
    %783 = vmatpush1.msra.mxu0 0.0
    %784 = vmatprep.subr.mxu0 0.0
    %785 = vmatpush1.msra.mxu0 0.0
    %786 = vmatprep.subr.mxu0 0.0
    %787 = vmatpush1.msra.mxu0 0.0
    %788 = vmatprep.subr.mxu0 0.0
    %789 = vmatpush1.msra.mxu0 0.0
    %790 = vmatprep.subr.mxu0 0.0
    %791 = vmatpush1.msra.mxu0 0.0
    %792 = vmatprep.subr.mxu0 0.0
    %793 = vmatpush1.msra.mxu0 0.0
    %794 = vmatprep.subr.mxu0 0.0
    %795 = vmatpush1.msra.mxu0 0.0
    %796 = vmatprep.subr.mxu0 0.0
    %797 = vmatpush1.msra.mxu0 0.0
    %798 = vmatprep.subr.mxu0 0.0
    %799 = vmatpush1.msra.mxu0 0.0
    %800 = vmatprep.subr.mxu0 0.0
    %801 = vmatpush1.msra.mxu0 0.0
    %802 = vmatprep.mubr.f32.mxu0 0.0
    %803 = vmatmul.mubr.f32.gmra.mrb[0].mxu0 %v721
    %v804 = vpop.f32.mrb[0].mxu0
    %v805 = vadd.f32 %v718, %v804
    %v806 = vpop.f32.mrb[0].mxu0
    %807 = vmatprep.mubr.f32.mxu0 0.0
    %808 = vmatmul.mubr.f32.gmra.mrb[0].mxu0 %v724
    %v809 = vpop.f32.mrb[0].mxu0
    %v810 = vadd.f32 %v718, %v809
    %v811 = vpop.f32.mrb[0].mxu0
    %812 = vmatprep.mubr.f32.mxu0 0.0
    %813 = vmatmul.mubr.f32.gmra.mrb[0].mxu0 %v727
    %v814 = vpop.f32.mrb[0].mxu0
    %v815 = vadd.f32 %v718, %v814
    %v816 = vpop.f32.mrb[0].mxu0
    %817 = vmatprep.mubr.f32.mxu0 0.0
    %818 = vmatmul.mubr.f32.gmra.mrb[0].mxu0 %v730
    %v819 = vpop.f32.mrb[0].mxu0
    %v820 = vadd.f32 %v718, %v819
    %v821 = vpop.f32.mrb[0].mxu0
    %822 = vmatprep.mubr.f32.mxu0 0.0
    %823 = vmatmul.mubr.f32.gmra.mrb[0].mxu0 %v733
    %v824 = vpop.f32.mrb[0].mxu0
    %v825 = vadd.f32 %v718, %v824
    %v826 = vpop.f32.mrb[0].mxu0
    %827 = vmatprep.mubr.f32.mxu0 0.0
    %828 = vmatmul.mubr.f32.gmra.mrb[0].mxu0 %v736
    %v829 = vpop.f32.mrb[0].mxu0
    %v830 = vadd.f32 %v718, %v829
    %v831 = vpop.f32.mrb[0].mxu0
    %832 = vdwg.mxu0
    %v833 = vmax.f32 %v805, 0.0
    %v834 = vmax.f32 %v810, 0.0
    %v835 = vmax.f32 %v815, 0.0
    %v836 = vmax.f32 %v820, 0.0
    %v837 = vmax.f32 %v825, 0.0
    %v838 = vmax.f32 %v830, 0.0
    %v839 = vlaneseq
    %v840 = vand.u32 %v839, 127
    %v841 = vmul.u32 %v420, 8
    %vm842 = vcmp.ge.s32.totalorder %v840, %v841
    %v843 = vadd.s32 %v420, 1
    %v844 = vmul.u32 %v843, 8
    %vm845 = vcmp.lt.s32.totalorder %v840, %v844
    %vm846 = vmand %vm842, %vm845
    %v847 = vsel %vm846, 1, 0
    %v848 = vcvt.s32.f32 %v847
    %vm849 = vcmask 392192
    %v851 = vsel %vm849, %v848, 0
    %853 = vmatprep.subr.mxu0 0.0
    %854 = vmatpush1.msra.mxu0 %v833
    %855 = vmatprep.subr.mxu0 0.0
    %856 = vmatpush1.msra.mxu0 %v834
    %857 = vmatprep.subr.mxu0 0.0
    %858 = vmatpush1.msra.mxu0 %v835
    %859 = vmatprep.subr.mxu0 0.0
    %860 = vmatpush1.msra.mxu0 %v836
    %861 = vmatprep.subr.mxu0 0.0
    %862 = vmatpush1.msra.mxu0 %v837
    %863 = vmatprep.subr.mxu0 0.0
    %864 = vmatpush1.msra.mxu0 %v838
    %865 = vmatprep.subr.mxu0 0.0
    %866 = vmatpush1.msra.mxu0 0.0
    %867 = vmatprep.subr.mxu0 0.0
    %868 = vmatpush1.msra.mxu0 0.0
    %869 = vmatprep.subr.mxu0 0.0
    %870 = vmatpush1.msra.mxu0 0.0
    %871 = vmatprep.subr.mxu0 0.0
    %872 = vmatpush1.msra.mxu0 0.0
    %873 = vmatprep.subr.mxu0 0.0
    %874 = vmatpush1.msra.mxu0 0.0
    %875 = vmatprep.subr.mxu0 0.0
    %876 = vmatpush1.msra.mxu0 0.0
    %877 = vmatprep.subr.mxu0 0.0
    %878 = vmatpush1.msra.mxu0 0.0
    %879 = vmatprep.subr.mxu0 0.0
    %880 = vmatpush1.msra.mxu0 0.0
    %881 = vmatprep.subr.mxu0 0.0
    %882 = vmatpush1.msra.mxu0 0.0
    %883 = vmatprep.subr.mxu0 0.0
    %884 = vmatpush1.msra.mxu0 0.0
    %885 = vmatprep.subr.mxu0 0.0
    %886 = vmatpush1.msra.mxu0 0.0
    %887 = vmatprep.subr.mxu0 0.0
    %888 = vmatpush1.msra.mxu0 0.0
    %889 = vmatprep.subr.mxu0 0.0
    %890 = vmatpush1.msra.mxu0 0.0
    %891 = vmatprep.subr.mxu0 0.0
    %892 = vmatpush1.msra.mxu0 0.0
    %893 = vmatprep.subr.mxu0 0.0
    %894 = vmatpush1.msra.mxu0 0.0
    %895 = vmatprep.subr.mxu0 0.0
    %896 = vmatpush1.msra.mxu0 0.0
    %897 = vmatprep.subr.mxu0 0.0
    %898 = vmatpush1.msra.mxu0 0.0
    %899 = vmatprep.subr.mxu0 0.0
    %900 = vmatpush1.msra.mxu0 0.0
    %901 = vmatprep.subr.mxu0 0.0
    %902 = vmatpush1.msra.mxu0 0.0
    %903 = vmatprep.subr.mxu0 0.0
    %904 = vmatpush1.msra.mxu0 0.0
    %905 = vmatprep.subr.mxu0 0.0
    %906 = vmatpush1.msra.mxu0 0.0
    %907 = vmatprep.subr.mxu0 0.0
    %908 = vmatpush1.msra.mxu0 0.0
    %909 = vmatprep.subr.mxu0 0.0
    %910 = vmatpush1.msra.mxu0 0.0
    %911 = vmatprep.subr.mxu0 0.0
    %912 = vmatpush1.msra.mxu0 0.0
    %913 = vmatprep.subr.mxu0 0.0
    %914 = vmatpush1.msra.mxu0 0.0
    %915 = vmatprep.subr.mxu0 0.0
    %916 = vmatpush1.msra.mxu0 0.0
    %917 = vmatprep.mubr.f32.mxu0 0.0
    %918 = vmatmul.mubr.f32.gmra.mrb[0].mxu0 %v851
    %v919 = vpop.f32.mrb[0].mxu0
    %v920 = vadd.f32 0.0, %v919
    %v921 = vpop.f32.mrb[0].mxu0
    %922 = vdwg.mxu0
    %v923 = vld [vmem:[%s13] sm:$0xff]
    %v924 = vld [vmem:[%s13 + $0x8] sm:$0xff]
    %v925 = vld [vmem:[%s13 + $0x10] sm:$0xff]
    %v926 = vld [vmem:[%s13 + $0x18] sm:$0xff]
    %v927 = vld [vmem:[%s14] sm:$0x1]
    %v929 = vlaneseq
    %v930 = vshrl.u32 %v929, 7
    %v931 = vsub.s32 0, %v930
    %v932 = vrot.slane %v927, %v931
    %v935 = vsel %vm589, %v920, 0
    %937 = vmatprep.subr.mxu0 0.0
    %938 = vmatpush1.msra.mxu0 %v923
    %939 = vmatprep.subr.mxu0 0.0
    %940 = vmatpush1.msra.mxu0 %v924
    %941 = vmatprep.subr.mxu0 0.0
    %942 = vmatpush1.msra.mxu0 %v925
    %943 = vmatprep.subr.mxu0 0.0
    %944 = vmatpush1.msra.mxu0 %v926
    %945 = vmatprep.subr.mxu0 0.0
    %946 = vmatpush1.msra.mxu0 0.0
    %947 = vmatprep.subr.mxu0 0.0
    %948 = vmatpush1.msra.mxu0 0.0
    %949 = vmatprep.subr.mxu0 0.0
    %950 = vmatpush1.msra.mxu0 0.0
    %951 = vmatprep.subr.mxu0 0.0
    %952 = vmatpush1.msra.mxu0 0.0
    %953 = vmatprep.subr.mxu0 0.0
    %954 = vmatpush1.msra.mxu0 0.0
    %955 = vmatprep.subr.mxu0 0.0
    %956 = vmatpush1.msra.mxu0 0.0
    %957 = vmatprep.subr.mxu0 0.0
    %958 = vmatpush1.msra.mxu0 0.0
    %959 = vmatprep.subr.mxu0 0.0
    %960 = vmatpush1.msra.mxu0 0.0
    %961 = vmatprep.subr.mxu0 0.0
    %962 = vmatpush1.msra.mxu0 0.0
    %963 = vmatprep.subr.mxu0 0.0
    %964 = vmatpush1.msra.mxu0 0.0
    %965 = vmatprep.subr.mxu0 0.0
    %966 = vmatpush1.msra.mxu0 0.0
    %967 = vmatprep.subr.mxu0 0.0
    %968 = vmatpush1.msra.mxu0 0.0
    %969 = vmatprep.subr.mxu0 0.0
    %970 = vmatpush1.msra.mxu0 0.0
    %971 = vmatprep.subr.mxu0 0.0
    %972 = vmatpush1.msra.mxu0 0.0
    %973 = vmatprep.subr.mxu0 0.0
    %974 = vmatpush1.msra.mxu0 0.0
    %975 = vmatprep.subr.mxu0 0.0
    %976 = vmatpush1.msra.mxu0 0.0
    %977 = vmatprep.subr.mxu0 0.0
    %978 = vmatpush1.msra.mxu0 0.0
    %979 = vmatprep.subr.mxu0 0.0
    %980 = vmatpush1.msra.mxu0 0.0
    %981 = vmatprep.subr.mxu0 0.0
    %982 = vmatpush1.msra.mxu0 0.0
    %983 = vmatprep.subr.mxu0 0.0
    %984 = vmatpush1.msra.mxu0 0.0
    %985 = vmatprep.subr.mxu0 0.0
    %986 = vmatpush1.msra.mxu0 0.0
    %987 = vmatprep.subr.mxu0 0.0
    %988 = vmatpush1.msra.mxu0 0.0
    %989 = vmatprep.subr.mxu0 0.0
    %990 = vmatpush1.msra.mxu0 0.0
    %991 = vmatprep.subr.mxu0 0.0
    %992 = vmatpush1.msra.mxu0 0.0
    %993 = vmatprep.subr.mxu0 0.0
    %994 = vmatpush1.msra.mxu0 0.0
    %995 = vmatprep.subr.mxu0 0.0
    %996 = vmatpush1.msra.mxu0 0.0
    %997 = vmatprep.subr.mxu0 0.0
    %998 = vmatpush1.msra.mxu0 0.0
    %999 = vmatprep.subr.mxu0 0.0
    %1000 = vmatpush1.msra.mxu0 0.0
    %1001 = vmatprep.mubr.f32.mxu0 0.0
    %1002 = vmatmul.mubr.f32.gmra.mrb[0].mxu0 %v935
    %v1003 = vpop.f32.mrb[0].mxu0
    %v1004 = vadd.f32 %v932, %v1003
    %v1005 = vpop.f32.mrb[0].mxu0
    %1006 = vdwg.mxu0
    %1007 = vst [vmem:[#allocation3] sm:$0x3f] %v1004
    // Predicated region
    $region62: #{tpu_custom_call.1} parent=1 // pred_check
      _
    $region63: #{tpu_custom_call.1} parent=1 // pred_check_branch
      %1009 = sbr.rel (0) target = $region65
    $region64: #{tpu_custom_call.1} parent=1 // pred_region
      %s1011 = ssub.s32 128, 128
      %1012 = vsyncadd [#allocation4], %s1011
      %s1014 = sshll.u32 [#allocation3], 4
      %s1015 = int_to_ptr.vmem [resolvable:$true] %s1014
      %1017 = dma.vmem_to_hbm [thread:$0]  %s1015, 128, %s15, [#allocation4]
    $region65: #{tpu_custom_call.1} parent=1 // pred_fallthru
      _
    // Predicated region
    $region66: #{tpu_custom_call.1} parent=1 // pred_check
      _
    $region67: #{tpu_custom_call.1} parent=1 // pred_check_branch
      %1019 = sbr.rel (0) target = $region69
    $region68: #{tpu_custom_call.1} parent=1 // pred_region
      %1020 = dma.done [#allocation4], 128
    $region69: #{tpu_custom_call.1} parent=1 // pred_fallthru
      _
    %1021 = vsyncpa [#allocation4], 1

</llo_original>
